<compile_context>
chip_gen: v7x
topology: tpu7x:2x2x1
jax: 0.10.0
libtpu: 0.0.40
codegen_flags: <defaults>
</compile_context>

<pallas_src>
import functools

import jax
import jax.numpy as jnp
from jax import lax
from jax.experimental import pallas as pl
from jax.experimental.pallas import tpu as pltpu

F_DIM = 20  # feature dim fixed by the module (nn.Linear(20, 20), rand_weight 20x20)


def _round_up(a, m):
    return (a + m - 1) // m * m


def _fixed_hidden_mlp_kernel(params_ref, x_ref, o_ref, *,
                             block_rows, n_valid, needs_mask):
    """One grid step: a (block_rows, F) slab of X -> one (1,1,1) partial sum.

    params_ref : (2, F, F) VMEM, resident across the grid
                   slab 0          = M1 = W.T @ rand_weight   (folded Linear)
                   slab 1, row 0   = c1 = b @ rand_weight + 1
                   slab 1, row 1   = colsum(W) = sum_o W[o, k]
    x_ref      : (block_rows, F) VMEM row block of (padded) X
    o_ref      : (1, 1, 1) VMEM per-block partial-sum output
    """
    x = x_ref[...]                      # (block_rows, F)
    m1 = params_ref[0]                  # (F, F)
    misc = params_ref[1]                # (F, F)
    c1 = misc[0:1, :]                   # (1, F)
    w_colsum = misc[1:2, :]             # (1, F)

    # relu((x @ W.T + b) @ rw + 1) == relu(x @ M1 + c1)  -- single MXU push.
    h = jnp.maximum(
        jnp.dot(x, m1, preferred_element_type=jnp.float32) + c1, 0.0)

    if needs_mask:
        # Zero the padded rows: they are NOT neutral (relu(c1) > 0 in general).
        row0 = pl.program_id(0) * block_rows
        row_idx = row0 + lax.broadcasted_iota(jnp.int32, (block_rows, 1), 0)
        h = jnp.where(row_idx < n_valid, h, 0.0)

    # sum over this block of (h @ W.T) == dot(colsum(h), colsum(W)).
    # The bias term (n_valid * sum(b)) is loop-invariant and added in the wrapper.
    h_col = jnp.sum(h, axis=0, keepdims=True)                      # (1, F)
    partial = jnp.sum(h_col * w_colsum, axis=1, keepdims=True)     # (1, 1)
    o_ref[...] = partial.reshape(1, 1, 1)


def fixed_hidden_mlp(x, w, b, rw, *, block_rows=1024):
    """Pallas forward of FixedHiddenMLP for a batch x of shape (N, 20)."""
    n, f = x.shape
    assert f == F_DIM, f

    x = x.astype(jnp.float32)
    w = w.astype(jnp.float32)
    b = b.astype(jnp.float32)
    rw = rw.astype(jnp.float32)

    # Big row blocks amortize the ~0.35us/step grid overhead and fill the MXU.
    # Cap at what the batch needs, keep a multiple of 8 (sublane), and cap at
    # 4096 (lane-padded X tile = 2 MiB -> fits default scoped VMEM on v5e too).
    block_rows = int(max(8, min(_round_up(block_rows, 8),
                                _round_up(n, 8), 4096)))
    n_pad = _round_up(n, block_rows)
    needs_mask = (n_pad != n)
    if needs_mask:
        x = jnp.pad(x, ((0, n_pad - n), (0, 0)))
    num_blocks = n_pad // block_rows

    # Wrapper-side folding (tiny 20x20 ops, done once per call):
    m1 = w.T @ rw                                       # folded first Linear
    misc = (jnp.zeros((F_DIM, F_DIM), jnp.float32)
            .at[0, :].set(b @ rw + 1.0)                 # folded bias + 1
            .at[1, :].set(jnp.sum(w, axis=0)))          # colsum(W) for the tail
    params = jnp.stack([m1, misc])                      # (2, F, F) -> one DMA

    kernel = functools.partial(
        _fixed_hidden_mlp_kernel,
        block_rows=block_rows, n_valid=n, needs_mask=needs_mask)

    partials = pl.pallas_call(
        kernel,
        out_shape=jax.ShapeDtypeStruct((num_blocks, 1, 1), jnp.float32),
        grid=(num_blocks,),
        in_specs=[
            pl.BlockSpec((2, F_DIM, F_DIM), lambda i: (0, 0, 0)),   # resident params
            pl.BlockSpec((block_rows, F_DIM), lambda i: (i, 0)),    # X row block
        ],
        out_specs=pl.BlockSpec((1, 1, 1), lambda i: (i, 0, 0)),     # per-block partial
        compiler_params=pltpu.CompilerParams(
            dimension_semantics=("parallel",)),   # independent blocks: both TCs on v7x
        cost_estimate=pl.CostEstimate(
            flops=2 * n_pad * F_DIM * F_DIM,
            transcendentals=0,
            bytes_accessed=(2 * F_DIM * F_DIM + n_pad * F_DIM + num_blocks) * 4),
    )(params, x)

    # Loop-invariant tail: sum over all rows/cols of the bias of the last Linear.
    return jnp.sum(partials) + jnp.float32(n) * jnp.sum(b)


def reference(x, w, b, rw):
    h = x @ w.T + b
    h = jnp.maximum(h @ rw + 1.0, 0.0)
    h = h @ w.T + b
    return jnp.sum(h)


if __name__ == "__main__":
    key = jax.random.PRNGKey(0)
    kx, kw, kb, kr = jax.random.split(key, 4)

    # Deterministic parameter init mirroring the module's __init__ shapes:
    #   nn.Linear(20, 20): W (20,20), b (20,) ~ U(-1/sqrt(20), 1/sqrt(20))
    #   rand_weight: (20, 20) ~ U(0, 1), non-trainable
    bound = 1.0 / (F_DIM ** 0.5)
    w = jax.random.uniform(kw, (F_DIM, F_DIM), minval=-bound, maxval=bound,
                           dtype=jnp.float32)
    b = jax.random.uniform(kb, (F_DIM,), minval=-bound, maxval=bound,
                           dtype=jnp.float32)
    rw = jax.random.uniform(kr, (F_DIM, F_DIM), dtype=jnp.float32)

    # Case 1: small batch, default block_rows (capped to the batch -> 1 block).
    x16 = jax.random.uniform(kx, (16, F_DIM), dtype=jnp.float32)
    out = jax.block_until_ready(fixed_hidden_mlp(x16, w, b, rw))
    ref = jax.block_until_ready(reference(x16, w, b, rw))
    # Algebraic folds reassociate f32 additions -> compare with a tolerance.
    assert jnp.allclose(out, ref, rtol=1e-4, atol=1e-3), (out, ref)

    # Case 2: batch not a multiple of block_rows -> exercises multi-block
    # parallel partial sums and the padded-row mask.
    x20 = jax.random.uniform(kx, (20, F_DIM), dtype=jnp.float32)
    out2 = jax.block_until_ready(fixed_hidden_mlp(x20, w, b, rw, block_rows=8))
    ref2 = jax.block_until_ready(reference(x20, w, b, rw))
    assert jnp.allclose(out2, ref2, rtol=1e-4, atol=1e-3), (out2, ref2)

    print("KERNEL_OK")
</pallas_src>

<mosaic_0001>
module attributes {stable_mosaic.version = 11 : i64} {
  func.func @_fixed_hidden_mlp_kernel(%arg0: i32, %arg1: memref<2x20x20xf32, #tpu.memory_space<vmem>>, %arg2: memref<16x20xf32, #tpu.memory_space<vmem>>, %arg3: memref<1x1x1xf32, #tpu.memory_space<vmem>>) attributes {dimension_semantics = [#tpu.dimension_semantics<parallel>], iteration_bounds = array<i64: 1>, scalar_prefetch = 0 : i64, scratch_operands = 0 : i64, tpu.core_type = #tpu.core_type<tc>, window_params = [{pipeline_mode = #tpu.pipeline_mode<synchronous>, transform_indices = @transform_0, window_bounds = array<i64: 2, 20, 20>}, {transform_indices = @transform_1, window_bounds = array<i64: 16, 20>}, {transform_indices = @transform_2, window_bounds = array<i64: 1, 1, 1>}]} {
    %c0 = arith.constant 0 : index
    %c0_0 = arith.constant 0 : index
    %0 = vector.load %arg2[%c0, %c0_0] : memref<16x20xf32, #tpu.memory_space<vmem>>, vector<16x20xf32>
    %c0_1 = arith.constant 0 : index
    %c0_2 = arith.constant 0 : index
    %c0_3 = arith.constant 0 : index
    %1 = vector.load %arg1[%c0_1, %c0_2, %c0_3] : memref<2x20x20xf32, #tpu.memory_space<vmem>>, vector<1x20x20xf32>
    %2 = vector.shape_cast %1 : vector<1x20x20xf32> to vector<20x20xf32>
    %c1 = arith.constant 1 : index
    %c0_4 = arith.constant 0 : index
    %c0_5 = arith.constant 0 : index
    %3 = vector.load %arg1[%c1, %c0_4, %c0_5] : memref<2x20x20xf32, #tpu.memory_space<vmem>>, vector<1x20x20xf32>
    %4 = vector.shape_cast %3 : vector<1x20x20xf32> to vector<20x20xf32>
    %5 = vector.extract_strided_slice %4 {offsets = [0, 0], sizes = [1, 20], strides = [1, 1]} : vector<20x20xf32> to vector<1x20xf32>
    %6 = vector.extract_strided_slice %4 {offsets = [1, 0], sizes = [1, 20], strides = [1, 1]} : vector<20x20xf32> to vector<1x20xf32>
    %cst = arith.constant dense<0.000000e+00> : vector<16x20xf32>
    %7 = tpu.matmul %0, %2, %cst {dimension_numbers = #tpu.dot_dimension_numbers<[1], [0], [0], [1], [0, 0, 1, 1], [], []>} : vector<16x20xf32>, vector<20x20xf32>, vector<16x20xf32> -> vector<16x20xf32>
    %8 = vector.broadcast %5 : vector<1x20xf32> to vector<16x20xf32>
    %9 = arith.addf %7, %8 : vector<16x20xf32>
    %cst_6 = arith.constant 0.000000e+00 : f32
    %10 = vector.broadcast %cst_6 : f32 to vector<16x20xf32>
    %11 = arith.maximumf %9, %10 : vector<16x20xf32>
    %cst_7 = arith.constant dense<0.000000e+00> : vector<20xf32>
    %12 = vector.multi_reduction <add>, %11, %cst_7 [0] : vector<16x20xf32> to vector<20xf32>
    %13 = vector.shape_cast %12 : vector<20xf32> to vector<1x20xf32>
    %14 = arith.mulf %13, %6 : vector<1x20xf32>
    %cst_8 = arith.constant dense<0.000000e+00> : vector<1xf32>
    %15 = vector.multi_reduction <add>, %14, %cst_8 [1] : vector<1x20xf32> to vector<1xf32>
    %16 = vector.shape_cast %15 : vector<1xf32> to vector<1x1xf32>
    %17 = vector.shape_cast %16 : vector<1x1xf32> to vector<1x1x1xf32>
    %c0_9 = arith.constant 0 : index
    %c0_10 = arith.constant 0 : index
    %c0_11 = arith.constant 0 : index
    %18 = vector.load %arg3[%c0_9, %c0_10, %c0_11] : memref<1x1x1xf32, #tpu.memory_space<vmem>>, vector<1x1x1xf32>
    tpu.vector_store %arg3[%c0_9, %c0_10, %c0_11], %17 {strides = array<i32>} : memref<1x1x1xf32, #tpu.memory_space<vmem>>, vector<1x1x1xf32>,
    return
  }
  func.func @transform_0(%arg0: i32) -> (i32, i32, i32) {
    %c0_i32 = arith.constant 0 : i32
    %c0_i32_0 = arith.constant 0 : i32
    %c0_i32_1 = arith.constant 0 : i32
    %c0_i32_2 = arith.constant 0 : i32
    return %c0_i32, %c0_i32_0, %c0_i32_1 : i32, i32, i32
  }
  func.func @transform_1(%arg0: i32) -> (i32, i32) {
    %c0_i32 = arith.constant 0 : i32
    %c0_i32_0 = arith.constant 0 : i32
    return %arg0, %c0_i32 : i32, i32
  }
  func.func @transform_2(%arg0: i32) -> (i32, i32, i32) {
    %c0_i32 = arith.constant 0 : i32
    %c0_i32_0 = arith.constant 0 : i32
    %c0_i32_1 = arith.constant 0 : i32
    return %arg0, %c0_i32, %c0_i32_0 : i32, i32, i32
  }
}

</mosaic_0001>

<llo_original>
// kernel: tpu_custom_call.1
$region0: #{tpu_custom_call.1}
  #allocation0 [shape = 'u32[]', space=smem, size = 0x4, offset = 0x4, fixed_abs, tag = 'smem constant byte address 0x4 - core index']
  #allocation1 [shape = 'u32[144,128]{1,0:T(1,128)}', space=vmem, size = 0x12000, scoped, tag = 'internal scratch']
  %s0 = inlined_call_operand.vmem [shape: f32[2,20,20], index: 0, kind: input, shape index: {}]
  %s1 = inlined_call_operand.vmem [shape: f32[16,20], index: 1, kind: input, shape index: {}]
  %s2 = inlined_call_operand.hbm [shape: f32[1,1,1], index: 2, kind: output, shape index: {}]
  %s3 = sld [smem:[#allocation0]]
  $region18: #{tpu_custom_call.1} parent=0
    _
  %s5 = ssub.s32 1, %s3
  %s6 = scalar_select 0, %s5, %s3
  $region1: #{tpu_custom_call.1} parent=0
    #allocation2 [shape = 'u8[512]{0}', space=vmem, size = 0x400, scoped, tag = 'output window, operand 0, single buffered']
    #allocation3 [shape = 's32[1]{0}', space=sflag, size = 0x4, scoped, tag = 'scoped memory for tpu_custom_call.1']
    %7 = vsyncpa [#allocation3], 0
    // Predicated region
    $region2: #{tpu_custom_call.1} parent=1 // pred_check
      _
    $region3: #{tpu_custom_call.1} parent=1 // pred_check_branch
      %9 = sbr.rel (0) target = $region5
    $region4: #{tpu_custom_call.1} parent=1 // pred_region
      _
    $region5: #{tpu_custom_call.1} parent=1 // pred_fallthru
      _
    // Predicated region
    $region6: #{tpu_custom_call.1} parent=1 // pred_check
      _
    $region7: #{tpu_custom_call.1} parent=1 // pred_check_branch
      %11 = sbr.rel (0) target = $region9
    $region8: #{tpu_custom_call.1} parent=1 // pred_region
      _
    $region9: #{tpu_custom_call.1} parent=1 // pred_fallthru
      _
    %v12 = vld [vmem:[%s1] sm:$0xff]
    %v13 = vld [vmem:[%s1 + $0x8] sm:$0xff]
    %v14 = vld [vmem:[%s0] sm:$0xff]
    %v15 = vld [vmem:[%s0 + $0x8] sm:$0xff]
    %v16 = vld [vmem:[%s0 + $0x10] sm:$0xf]
    %s17 = scalar_lea.vmem %s0, 24
    %v18 = vld [vmem:[%s17] sm:$0xff]
    %v19 = vlaneseq
    %v20 = vshrl.u32 %v19, 7
    %v21 = vsub.s32 0, %v20
    %v22 = vrot.slane %v18, %v21
    %vm23 = vcmask 162816
    %v25 = vsel %vm23, %v12, 0
    %v28 = vsel %vm23, %v13, 0
    %vm30 = vcmask 1043456
    %v32 = vsel %vm30, %v16, 0
    %34 = vmatprep.subr.mxu0 0.0
    %35 = vmatpush1.msra.mxu0 %v14
    %36 = vmatprep.subr.mxu0 0.0
    %37 = vmatpush1.msra.mxu0 %v15
    %38 = vmatprep.subr.mxu0 0.0
    %39 = vmatpush1.msra.mxu0 %v32
    %40 = vmatprep.subr.mxu0 0.0
    %41 = vmatpush1.msra.mxu0 0.0
    %42 = vmatprep.subr.mxu0 0.0
    %43 = vmatpush1.msra.mxu0 0.0
    %44 = vmatprep.subr.mxu0 0.0
    %45 = vmatpush1.msra.mxu0 0.0
    %46 = vmatprep.subr.mxu0 0.0
    %47 = vmatpush1.msra.mxu0 0.0
    %48 = vmatprep.subr.mxu0 0.0
    %49 = vmatpush1.msra.mxu0 0.0
    %50 = vmatprep.subr.mxu0 0.0
    %51 = vmatpush1.msra.mxu0 0.0
    %52 = vmatprep.subr.mxu0 0.0
    %53 = vmatpush1.msra.mxu0 0.0
    %54 = vmatprep.subr.mxu0 0.0
    %55 = vmatpush1.msra.mxu0 0.0
    %56 = vmatprep.subr.mxu0 0.0
    %57 = vmatpush1.msra.mxu0 0.0
    %58 = vmatprep.subr.mxu0 0.0
    %59 = vmatpush1.msra.mxu0 0.0
    %60 = vmatprep.subr.mxu0 0.0
    %61 = vmatpush1.msra.mxu0 0.0
    %62 = vmatprep.subr.mxu0 0.0
    %63 = vmatpush1.msra.mxu0 0.0
    %64 = vmatprep.subr.mxu0 0.0
    %65 = vmatpush1.msra.mxu0 0.0
    %66 = vmatprep.subr.mxu0 0.0
    %67 = vmatpush1.msra.mxu0 0.0
    %68 = vmatprep.subr.mxu0 0.0
    %69 = vmatpush1.msra.mxu0 0.0
    %70 = vmatprep.subr.mxu0 0.0
    %71 = vmatpush1.msra.mxu0 0.0
    %72 = vmatprep.subr.mxu0 0.0
    %73 = vmatpush1.msra.mxu0 0.0
    %74 = vmatprep.subr.mxu0 0.0
    %75 = vmatpush1.msra.mxu0 0.0
    %76 = vmatprep.subr.mxu0 0.0
    %77 = vmatpush1.msra.mxu0 0.0
    %78 = vmatprep.subr.mxu0 0.0
    %79 = vmatpush1.msra.mxu0 0.0
    %80 = vmatprep.subr.mxu0 0.0
    %81 = vmatpush1.msra.mxu0 0.0
    %82 = vmatprep.subr.mxu0 0.0
    %83 = vmatpush1.msra.mxu0 0.0
    %84 = vmatprep.subr.mxu0 0.0
    %85 = vmatpush1.msra.mxu0 0.0
    %86 = vmatprep.subr.mxu0 0.0
    %87 = vmatpush1.msra.mxu0 0.0
    %88 = vmatprep.subr.mxu0 0.0
    %89 = vmatpush1.msra.mxu0 0.0
    %90 = vmatprep.subr.mxu0 0.0
    %91 = vmatpush1.msra.mxu0 0.0
    %92 = vmatprep.subr.mxu0 0.0
    %93 = vmatpush1.msra.mxu0 0.0
    %94 = vmatprep.subr.mxu0 0.0
    %95 = vmatpush1.msra.mxu0 0.0
    %96 = vmatprep.subr.mxu0 0.0
    %97 = vmatpush1.msra.mxu0 0.0
    %98 = vmatprep.mubr.f32.mxu0 0.0
    %99 = vmatmul.mubr.f32.gmra.mrb[0].mxu0 %v25
    %v100 = vpop.f32.mrb[0].mxu0
    %v101 = vadd.f32 %v22, %v100
    %v102 = vpop.f32.mrb[0].mxu0
    %103 = vmatprep.mubr.f32.mxu0 0.0
    %104 = vmatmul.mubr.f32.gmra.mrb[0].mxu0 %v28
    %v105 = vpop.f32.mrb[0].mxu0
    %v106 = vadd.f32 %v22, %v105
    %v107 = vpop.f32.mrb[0].mxu0
    %108 = vdwg.mxu0
    %v109 = vmax.f32 %v101, 0.0
    %v110 = vmax.f32 %v106, 0.0
    %v111 = vsel %vm23, %v109, 0.0
    %v112 = vsel %vm23, %v110, 0.0
    %v113 = vadd.f32 %v111, %v112
    %v114 = vrot.slane %v113, 4
    %v115 = vadd.f32 %v113, %v114
    %v116 = vrot.slane %v115, 2
    %v117 = vadd.f32 %v115, %v116
    %v118 = vrot.slane %v117, 1
    %v119 = vadd.f32 %v117, %v118
    %v120 = vmul.f32 %v119, %v18
    %vm121 = vcmask 156673
    %v122 = vsel %vm121, %v120, 0.0
    %123 = vadd.xlane.f32.xlu0 %v122
    %v124 = vpop.xlane.xlu0 %123
    %vm125 = vcmask 1025
    %126 = vst.msk [vmem:[#allocation2 - $0x1] sm:$0x2] %vm125, %v124
    // Predicated region
    $region10: #{tpu_custom_call.1} parent=1 // pred_check
      _
    $region11: #{tpu_custom_call.1} parent=1 // pred_check_branch
      %128 = sbr.rel (0) target = $region13
    $region12: #{tpu_custom_call.1} parent=1 // pred_region
      %s130 = ssub.s32 16, 16
      %131 = vsyncadd [#allocation3], %s130
      %s133 = sshll.u32 [#allocation2], 4
      %s134 = int_to_ptr.vmem [resolvable:$true] %s133
      %136 = dma.vmem_to_hbm [thread:$0]  %s134, 16, %s2, [#allocation3]
    $region13: #{tpu_custom_call.1} parent=1 // pred_fallthru
      _
    // Predicated region
    $region14: #{tpu_custom_call.1} parent=1 // pred_check
      _
    $region15: #{tpu_custom_call.1} parent=1 // pred_check_branch
      %138 = sbr.rel (0) target = $region17
    $region16: #{tpu_custom_call.1} parent=1 // pred_region
      %139 = dma.done [#allocation3], 16
    $region17: #{tpu_custom_call.1} parent=1 // pred_fallthru
      _
    %140 = vsyncpa [#allocation3], 1

</llo_original>
